<compile_context>
chip_gen: v6e
topology: v6e:2x2x1
jax: 0.10.0
libtpu: 0.0.40
codegen_flags: <defaults>
</compile_context>

<pallas_src>
import numpy as np
import jax
import jax.numpy as jnp
from jax.experimental import pallas as pl
from jax.experimental.pallas import tpu as pltpu


LATENT_DIMS = 2
PAD = 32           # every layer is zero-padded to (PAD, PAD) weights
OUT_ROWS = 8       # packed output slab rows (multiple of 8)
TB_DEFAULT = 2048  # batch tile (lanes); multiple of 128, amortizes per-step overhead

# True (fan_in, fan_out) of the 9 PyTorch Linear layers, in execution order.
_TORCH_LAYERS = [
    (25, 16),           # 0 encoder.dense.0      (relu)
    (16, 16),           # 1 encoder.dense.2      (relu)
    (16, 32),           # 2 encoder.dense.4      (relu)
    (32, LATENT_DIMS),  # 3 encoder.dense_for_mu
    (32, LATENT_DIMS),  # 4 encoder.dense_for_sigma (tanh*5 applied in kernel)
    (LATENT_DIMS + 2, 32),  # 5 decoder.dense.0  (relu)
    (32, 16),           # 6 decoder.dense.2      (relu)
    (16, 16),           # 7 decoder.dense.4      (relu)
    (16, 1),            # 8 decoder.dense.6
]

# After fusing the mu/sigma heads into one matmul we have 8 packed layers.
N_FUSED = 8
_ROW_MU = 0       # mu head rows 0..1 of the fused-head output
_ROW_SIGMA = 8    # sigma head rows 8..9  (sublane-aligned slice start)

# Input slab row layout (feature axis, 32 rows total):
#   rows  0..24 : flattened 5x5 grid
#   rows 25..26 : eps (standard normal, one per latent dim)
#   row      27 : dayexp (raw)
#   row      28 : delta  (raw)
#   rows 29..31 : zero padding
_ROW_EPS = 25
_ROW_DAYEXP = 27
_ROW_DELTA = 28

# Output slab row layout (8 rows total):
#   row      0  : decoder reconstruction
#   rows  1..2  : mu
#   rows  3..4  : log_sigma
#   rows  5..7  : zero padding


def _round_up(n, m):
    return ((n + m - 1) // m) * m


def _fin_vae_point_kernel(x_ref, w_ref, b_ref, o_ref):
    """x_ref: (32, TB) input slab; w_ref: (8,32,32); b_ref: (8,32,1); o_ref: (8, TB)."""
    f32 = jnp.float32
    slab = x_ref[...]                     # (32, TB)
    tb = slab.shape[1]

    def layer(li, h, relu):
        # Uniform (32,32) @ (32,TB) matmul; zero padding in w/b makes the
        # inactive rows/columns inert.  Bias is a (32,1) sublane vector,
        # broadcast along lanes (cheap relative to the HBM stream).
        y = jnp.dot(w_ref[li], h, preferred_element_type=f32) + b_ref[li]
        return jnp.maximum(y, 0.0) if relu else y

    # ---- encoder trunk ----
    h = layer(0, slab, True)              # padded cols 25..31 of W0 are zero,
    h = layer(1, h, True)                 # so the eps/dayexp/delta rows are ignored
    x1 = layer(2, h, True)                # (32, TB), all rows real

    # ---- fused encoder heads (mu rows 0..1, sigma rows 8..9) ----
    heads = layer(3, x1, False)
    mu = heads[_ROW_MU:_ROW_MU + LATENT_DIMS]                    # (2, TB)
    log_sigma = 5.0 * jnp.tanh(heads[_ROW_SIGMA:_ROW_SIGMA + LATENT_DIMS])
    sigma = jnp.exp(log_sigma)

    # ---- reparameterisation ----
    eps = slab[_ROW_EPS:_ROW_EPS + LATENT_DIMS]                  # (2, TB)
    z = mu + sigma * eps

    # ---- decoder input: cat([z, dayexp_norm, delta_norm]) padded to 32 rows ----
    day_n = (slab[_ROW_DAYEXP:_ROW_DAYEXP + 1] - 10.0) * (1.0 / (365.0 - 10.0))
    del_n = (slab[_ROW_DELTA:_ROW_DELTA + 1] - 10.0) * (1.0 / (90.0 - 10.0))
    z_exp = jnp.concatenate(
        [z, day_n, del_n, jnp.zeros((PAD - (LATENT_DIMS + 2), tb), f32)], axis=0)

    # ---- decoder ----
    d = layer(4, z_exp, True)             # (32, TB), all rows real
    d = layer(5, d, True)
    d = layer(6, d, True)
    out_p = layer(7, d, False)            # row 0 is the reconstruction

    # Single lane-dense full-tile store of the packed output slab.
    o_ref[...] = jnp.concatenate(
        [out_p[:1], mu, log_sigma, jnp.zeros((OUT_ROWS - 5, tb), f32)], axis=0)


def init_params(key):
    """PyTorch-Linear-like uniform init; weights in torch layout (out, in)."""
    ws, bs = [], []
    for (fan_in, fan_out) in _TORCH_LAYERS:
        key, kw, kb = jax.random.split(key, 3)
        bound = 1.0 / float(np.sqrt(fan_in))
        ws.append(jax.random.uniform(kw, (fan_out, fan_in), jnp.float32, -bound, bound))
        bs.append(jax.random.uniform(kb, (fan_out,), jnp.float32, -bound, bound))
    return ws, bs


def pack_params(ws, bs):
    """Zero-pad layers to (32,32)/(32,1), fuse mu/sigma heads, pack into two slabs."""
    w_np = np.zeros((N_FUSED, PAD, PAD), np.float32)
    b_np = np.zeros((N_FUSED, PAD, 1), np.float32)

    def put(slot, row0, w, b):
        w = np.asarray(w)
        b = np.asarray(b)
        o, n = w.shape
        w_np[slot, row0:row0 + o, :n] = w
        b_np[slot, row0:row0 + o, 0] = b

    put(0, 0, ws[0], bs[0])               # encoder.dense.0
    put(1, 0, ws[1], bs[1])               # encoder.dense.2
    put(2, 0, ws[2], bs[2])               # encoder.dense.4
    put(3, _ROW_MU, ws[3], bs[3])         # mu head rows 0..1
    put(3, _ROW_SIGMA, ws[4], bs[4])      # sigma head rows 8..9 (fused layer)
    put(4, 0, ws[5], bs[5])               # decoder.dense.0
    put(5, 0, ws[6], bs[6])               # decoder.dense.2
    put(6, 0, ws[7], bs[7])               # decoder.dense.4
    put(7, 0, ws[8], bs[8])               # decoder.dense.6
    return jnp.asarray(w_np), jnp.asarray(b_np)


def fin_vae_point_forward(x_nchw, dayexp, delta, eps, w_slab, b_slab, *, tb=TB_DEFAULT):
    """Forward pass of FinVAEPoint.

    x_nchw: (B,1,5,5)  dayexp,delta: (B,1)  eps: (B,2) standard normal.
    Returns (reconstruction (B,1), mu (B,2), log_sigma (B,2)).
    """
    B = x_nchw.shape[0]
    # Adaptive tile: don't pad tiny batches all the way to TB_DEFAULT.
    tb = min(tb, _round_up(B, 128))
    b_pad = _round_up(B, tb)

    # Pack all per-sample inputs into one (32, B_pad) slab, batch on lanes.
    x_flat = x_nchw.reshape(B, 25).astype(jnp.float32)
    slab_bt = jnp.concatenate(
        [x_flat,
         eps.astype(jnp.float32),
         dayexp.astype(jnp.float32),
         delta.astype(jnp.float32),
         jnp.zeros((B, PAD - 29), jnp.float32)], axis=1)          # (B, 32)
    slab = slab_bt.T                                              # (32, B)
    if b_pad != B:
        slab = jnp.pad(slab, ((0, 0), (0, b_pad - B)))

    grid = (b_pad // tb,)
    out_slab = pl.pallas_call(
        _fin_vae_point_kernel,
        out_shape=jax.ShapeDtypeStruct((OUT_ROWS, b_pad), jnp.float32),
        grid_spec=pltpu.PrefetchScalarGridSpec(
            num_scalar_prefetch=0,
            grid=grid,
            in_specs=[
                # streamed input tile: batch (lanes) advances with the grid
                pl.BlockSpec((PAD, tb), lambda i: (0, i)),
                # packed params: constant index_map -> DMA'd once, stay resident
                pl.BlockSpec((N_FUSED, PAD, PAD), lambda i: (0, 0, 0)),
                pl.BlockSpec((N_FUSED, PAD, 1), lambda i: (0, 0, 0)),
            ],
            out_specs=pl.BlockSpec((OUT_ROWS, tb), lambda i: (0, i)),
        ),
        compiler_params=pltpu.CompilerParams(
            dimension_semantics=("parallel",)),   # shards batch tiles across TCs (v7x)
    )(slab, w_slab, b_slab)

    recon = out_slab[0, :B].reshape(B, 1)
    mu = out_slab[1:1 + LATENT_DIMS, :B].T
    log_sigma = out_slab[3:3 + LATENT_DIMS, :B].T
    return recon, mu, log_sigma


def _reference_forward(x_nchw, dayexp, delta, eps, ws, bs):
    """Pure-JAX reference of the same forward pass (batch-major layout)."""
    h = x_nchw.reshape(x_nchw.shape[0], 25).astype(jnp.float32)
    for li in range(3):
        h = jnp.maximum(h @ ws[li].T + bs[li], 0.0)
    mu = h @ ws[3].T + bs[3]
    log_sigma = 5.0 * jnp.tanh(h @ ws[4].T + bs[4])
    sigma = jnp.exp(log_sigma)
    z = mu + sigma * eps
    day_n = (dayexp - 10.0) / (365.0 - 10.0)
    del_n = (delta - 10.0) / (90.0 - 10.0)
    d = jnp.concatenate([z, day_n, del_n], axis=1)
    for li in range(5, 8):
        d = jnp.maximum(d @ ws[li].T + bs[li], 0.0)
    out = d @ ws[8].T + bs[8]
    return out, mu, log_sigma


if __name__ == "__main__":
    key = jax.random.PRNGKey(0)
    kp, kx, kd, kdl, ke = jax.random.split(key, 5)

    ws, bs = init_params(kp)
    w_slab, b_slab = pack_params(ws, bs)

    # NOTE: at B=8 the kernel is pure launch/DMA overhead; the grid/layout
    # choices only pay off once B is large enough that streaming x dominates.
    B = 8
    x = jax.random.normal(kx, (B, 1, 5, 5), dtype=jnp.float32)
    dayexp = jax.random.uniform(kd, (B, 1), jnp.float32, 10.0, 365.0)
    delta = jax.random.uniform(kdl, (B, 1), jnp.float32, 10.0, 90.0)
    eps = jax.random.normal(ke, (B, LATENT_DIMS), dtype=jnp.float32)

    recon, mu, log_sigma = fin_vae_point_forward(x, dayexp, delta, eps, w_slab, b_slab)
    recon, mu, log_sigma = jax.block_until_ready((recon, mu, log_sigma))

    ref_recon, ref_mu, ref_ls = _reference_forward(x, dayexp, delta, eps, ws, bs)

    assert recon.shape == (B, 1)
    assert mu.shape == (B, LATENT_DIMS)
    assert log_sigma.shape == (B, LATENT_DIMS)
    assert jnp.allclose(recon, ref_recon, atol=1e-4, rtol=1e-4)
    assert jnp.allclose(mu, ref_mu, atol=1e-4, rtol=1e-4)
    assert jnp.allclose(log_sigma, ref_ls, atol=1e-4, rtol=1e-4)

    print("KERNEL_OK")
</pallas_src>

<mosaic_0001>
module attributes {stable_mosaic.version = 11 : i64} {
  func.func @_fin_vae_point_kernel(%arg0: i32, %arg1: memref<32x128xf32, #tpu.memory_space<vmem>>, %arg2: memref<8x32x32xf32, #tpu.memory_space<vmem>>, %arg3: memref<8x32x1xf32, #tpu.memory_space<vmem>>, %arg4: memref<8x128xf32, #tpu.memory_space<vmem>>) attributes {dimension_semantics = [#tpu.dimension_semantics<parallel>], iteration_bounds = array<i64: 1>, scalar_prefetch = 0 : i64, scratch_operands = 0 : i64, tpu.core_type = #tpu.core_type<tc>, window_params = [{transform_indices = @transform_0, window_bounds = array<i64: 32, 128>}, {pipeline_mode = #tpu.pipeline_mode<synchronous>, transform_indices = @transform_1, window_bounds = array<i64: 8, 32, 32>}, {pipeline_mode = #tpu.pipeline_mode<synchronous>, transform_indices = @transform_2, window_bounds = array<i64: 8, 32, 1>}, {transform_indices = @transform_3, window_bounds = array<i64: 8, 128>}]} {
    %c0 = arith.constant 0 : index
    %c0_0 = arith.constant 0 : index
    %0 = vector.load %arg1[%c0, %c0_0] : memref<32x128xf32, #tpu.memory_space<vmem>>, vector<32x128xf32>
    %c0_1 = arith.constant 0 : index
    %c0_2 = arith.constant 0 : index
    %c0_3 = arith.constant 0 : index
    %1 = vector.load %arg2[%c0_1, %c0_2, %c0_3] : memref<8x32x32xf32, #tpu.memory_space<vmem>>, vector<1x32x32xf32>
    %2 = vector.shape_cast %1 : vector<1x32x32xf32> to vector<32x32xf32>
    %cst = arith.constant dense<0.000000e+00> : vector<32x128xf32>
    %3 = tpu.matmul %2, %0, %cst {dimension_numbers = #tpu.dot_dimension_numbers<[1], [0], [0], [1], [0, 0, 1, 1], [], []>} : vector<32x32xf32>, vector<32x128xf32>, vector<32x128xf32> -> vector<32x128xf32>
    %c0_4 = arith.constant 0 : index
    %c0_5 = arith.constant 0 : index
    %c0_6 = arith.constant 0 : index
    %4 = vector.load %arg3[%c0_4, %c0_5, %c0_6] : memref<8x32x1xf32, #tpu.memory_space<vmem>>, vector<1x32x1xf32>
    %5 = vector.shape_cast %4 : vector<1x32x1xf32> to vector<32x1xf32>
    %6 = vector.broadcast %5 : vector<32x1xf32> to vector<32x128xf32>
    %7 = arith.addf %3, %6 : vector<32x128xf32>
    %cst_7 = arith.constant 0.000000e+00 : f32
    %8 = vector.broadcast %cst_7 : f32 to vector<32x128xf32>
    %9 = arith.maximumf %7, %8 : vector<32x128xf32>
    %c1 = arith.constant 1 : index
    %c0_8 = arith.constant 0 : index
    %c0_9 = arith.constant 0 : index
    %10 = vector.load %arg2[%c1, %c0_8, %c0_9] : memref<8x32x32xf32, #tpu.memory_space<vmem>>, vector<1x32x32xf32>
    %11 = vector.shape_cast %10 : vector<1x32x32xf32> to vector<32x32xf32>
    %cst_10 = arith.constant dense<0.000000e+00> : vector<32x128xf32>
    %12 = tpu.matmul %11, %9, %cst_10 {dimension_numbers = #tpu.dot_dimension_numbers<[1], [0], [0], [1], [0, 0, 1, 1], [], []>} : vector<32x32xf32>, vector<32x128xf32>, vector<32x128xf32> -> vector<32x128xf32>
    %c1_11 = arith.constant 1 : index
    %c0_12 = arith.constant 0 : index
    %c0_13 = arith.constant 0 : index
    %13 = vector.load %arg3[%c1_11, %c0_12, %c0_13] : memref<8x32x1xf32, #tpu.memory_space<vmem>>, vector<1x32x1xf32>
    %14 = vector.shape_cast %13 : vector<1x32x1xf32> to vector<32x1xf32>
    %15 = vector.broadcast %14 : vector<32x1xf32> to vector<32x128xf32>
    %16 = arith.addf %12, %15 : vector<32x128xf32>
    %cst_14 = arith.constant 0.000000e+00 : f32
    %17 = vector.broadcast %cst_14 : f32 to vector<32x128xf32>
    %18 = arith.maximumf %16, %17 : vector<32x128xf32>
    %c2 = arith.constant 2 : index
    %c0_15 = arith.constant 0 : index
    %c0_16 = arith.constant 0 : index
    %19 = vector.load %arg2[%c2, %c0_15, %c0_16] : memref<8x32x32xf32, #tpu.memory_space<vmem>>, vector<1x32x32xf32>
    %20 = vector.shape_cast %19 : vector<1x32x32xf32> to vector<32x32xf32>
    %cst_17 = arith.constant dense<0.000000e+00> : vector<32x128xf32>
    %21 = tpu.matmul %20, %18, %cst_17 {dimension_numbers = #tpu.dot_dimension_numbers<[1], [0], [0], [1], [0, 0, 1, 1], [], []>} : vector<32x32xf32>, vector<32x128xf32>, vector<32x128xf32> -> vector<32x128xf32>
    %c2_18 = arith.constant 2 : index
    %c0_19 = arith.constant 0 : index
    %c0_20 = arith.constant 0 : index
    %22 = vector.load %arg3[%c2_18, %c0_19, %c0_20] : memref<8x32x1xf32, #tpu.memory_space<vmem>>, vector<1x32x1xf32>
    %23 = vector.shape_cast %22 : vector<1x32x1xf32> to vector<32x1xf32>
    %24 = vector.broadcast %23 : vector<32x1xf32> to vector<32x128xf32>
    %25 = arith.addf %21, %24 : vector<32x128xf32>
    %cst_21 = arith.constant 0.000000e+00 : f32
    %26 = vector.broadcast %cst_21 : f32 to vector<32x128xf32>
    %27 = arith.maximumf %25, %26 : vector<32x128xf32>
    %c3 = arith.constant 3 : index
    %c0_22 = arith.constant 0 : index
    %c0_23 = arith.constant 0 : index
    %28 = vector.load %arg2[%c3, %c0_22, %c0_23] : memref<8x32x32xf32, #tpu.memory_space<vmem>>, vector<1x32x32xf32>
    %29 = vector.shape_cast %28 : vector<1x32x32xf32> to vector<32x32xf32>
    %cst_24 = arith.constant dense<0.000000e+00> : vector<32x128xf32>
    %30 = tpu.matmul %29, %27, %cst_24 {dimension_numbers = #tpu.dot_dimension_numbers<[1], [0], [0], [1], [0, 0, 1, 1], [], []>} : vector<32x32xf32>, vector<32x128xf32>, vector<32x128xf32> -> vector<32x128xf32>
    %c3_25 = arith.constant 3 : index
    %c0_26 = arith.constant 0 : index
    %c0_27 = arith.constant 0 : index
    %31 = vector.load %arg3[%c3_25, %c0_26, %c0_27] : memref<8x32x1xf32, #tpu.memory_space<vmem>>, vector<1x32x1xf32>
    %32 = vector.shape_cast %31 : vector<1x32x1xf32> to vector<32x1xf32>
    %33 = vector.broadcast %32 : vector<32x1xf32> to vector<32x128xf32>
    %34 = arith.addf %30, %33 : vector<32x128xf32>
    %35 = vector.extract_strided_slice %34 {offsets = [0, 0], sizes = [2, 128], strides = [1, 1]} : vector<32x128xf32> to vector<2x128xf32>
    %36 = vector.extract_strided_slice %34 {offsets = [8, 0], sizes = [2, 128], strides = [1, 1]} : vector<32x128xf32> to vector<2x128xf32>
    %37 = math.tanh %36 : vector<2x128xf32>
    %cst_28 = arith.constant 5.000000e+00 : f32
    %38 = vector.broadcast %cst_28 : f32 to vector<2x128xf32>
    %39 = arith.mulf %38, %37 : vector<2x128xf32>
    %40 = math.exp %39 : vector<2x128xf32>
    %41 = vector.extract_strided_slice %0 {offsets = [25, 0], sizes = [2, 128], strides = [1, 1]} : vector<32x128xf32> to vector<2x128xf32>
    %42 = arith.mulf %40, %41 : vector<2x128xf32>
    %43 = arith.addf %35, %42 : vector<2x128xf32>
    %44 = vector.extract_strided_slice %0 {offsets = [27, 0], sizes = [1, 128], strides = [1, 1]} : vector<32x128xf32> to vector<1x128xf32>
    %cst_29 = arith.constant 1.000000e+01 : f32
    %45 = vector.broadcast %cst_29 : f32 to vector<1x128xf32>
    %46 = arith.subf %44, %45 : vector<1x128xf32>
    %cst_30 = arith.constant 0.00281690131 : f32
    %47 = vector.broadcast %cst_30 : f32 to vector<1x128xf32>
    %48 = arith.mulf %46, %47 : vector<1x128xf32>
    %49 = vector.extract_strided_slice %0 {offsets = [28, 0], sizes = [1, 128], strides = [1, 1]} : vector<32x128xf32> to vector<1x128xf32>
    %cst_31 = arith.constant 1.000000e+01 : f32
    %50 = vector.broadcast %cst_31 : f32 to vector<1x128xf32>
    %51 = arith.subf %49, %50 : vector<1x128xf32>
    %cst_32 = arith.constant 1.250000e-02 : f32
    %52 = vector.broadcast %cst_32 : f32 to vector<1x128xf32>
    %53 = arith.mulf %51, %52 : vector<1x128xf32>
    %cst_33 = arith.constant 0.000000e+00 : f32
    %54 = vector.broadcast %cst_33 : f32 to vector<28x128xf32>
    %55 = tpu.concatenate %43, %48, %53, %54 in 0 : vector<2x128xf32>, vector<1x128xf32>, vector<1x128xf32>, vector<28x128xf32> -> vector<32x128xf32>
    %c4 = arith.constant 4 : index
    %c0_34 = arith.constant 0 : index
    %c0_35 = arith.constant 0 : index
    %56 = vector.load %arg2[%c4, %c0_34, %c0_35] : memref<8x32x32xf32, #tpu.memory_space<vmem>>, vector<1x32x32xf32>
    %57 = vector.shape_cast %56 : vector<1x32x32xf32> to vector<32x32xf32>
    %cst_36 = arith.constant dense<0.000000e+00> : vector<32x128xf32>
    %58 = tpu.matmul %57, %55, %cst_36 {dimension_numbers = #tpu.dot_dimension_numbers<[1], [0], [0], [1], [0, 0, 1, 1], [], []>} : vector<32x32xf32>, vector<32x128xf32>, vector<32x128xf32> -> vector<32x128xf32>
    %c4_37 = arith.constant 4 : index
    %c0_38 = arith.constant 0 : index
    %c0_39 = arith.constant 0 : index
    %59 = vector.load %arg3[%c4_37, %c0_38, %c0_39] : memref<8x32x1xf32, #tpu.memory_space<vmem>>, vector<1x32x1xf32>
    %60 = vector.shape_cast %59 : vector<1x32x1xf32> to vector<32x1xf32>
    %61 = vector.broadcast %60 : vector<32x1xf32> to vector<32x128xf32>
    %62 = arith.addf %58, %61 : vector<32x128xf32>
    %cst_40 = arith.constant 0.000000e+00 : f32
    %63 = vector.broadcast %cst_40 : f32 to vector<32x128xf32>
    %64 = arith.maximumf %62, %63 : vector<32x128xf32>
    %c5 = arith.constant 5 : index
    %c0_41 = arith.constant 0 : index
    %c0_42 = arith.constant 0 : index
    %65 = vector.load %arg2[%c5, %c0_41, %c0_42] : memref<8x32x32xf32, #tpu.memory_space<vmem>>, vector<1x32x32xf32>
    %66 = vector.shape_cast %65 : vector<1x32x32xf32> to vector<32x32xf32>
    %cst_43 = arith.constant dense<0.000000e+00> : vector<32x128xf32>
    %67 = tpu.matmul %66, %64, %cst_43 {dimension_numbers = #tpu.dot_dimension_numbers<[1], [0], [0], [1], [0, 0, 1, 1], [], []>} : vector<32x32xf32>, vector<32x128xf32>, vector<32x128xf32> -> vector<32x128xf32>
    %c5_44 = arith.constant 5 : index
    %c0_45 = arith.constant 0 : index
    %c0_46 = arith.constant 0 : index
    %68 = vector.load %arg3[%c5_44, %c0_45, %c0_46] : memref<8x32x1xf32, #tpu.memory_space<vmem>>, vector<1x32x1xf32>
    %69 = vector.shape_cast %68 : vector<1x32x1xf32> to vector<32x1xf32>
    %70 = vector.broadcast %69 : vector<32x1xf32> to vector<32x128xf32>
    %71 = arith.addf %67, %70 : vector<32x128xf32>
    %cst_47 = arith.constant 0.000000e+00 : f32
    %72 = vector.broadcast %cst_47 : f32 to vector<32x128xf32>
    %73 = arith.maximumf %71, %72 : vector<32x128xf32>
    %c6 = arith.constant 6 : index
    %c0_48 = arith.constant 0 : index
    %c0_49 = arith.constant 0 : index
    %74 = vector.load %arg2[%c6, %c0_48, %c0_49] : memref<8x32x32xf32, #tpu.memory_space<vmem>>, vector<1x32x32xf32>
    %75 = vector.shape_cast %74 : vector<1x32x32xf32> to vector<32x32xf32>
    %cst_50 = arith.constant dense<0.000000e+00> : vector<32x128xf32>
    %76 = tpu.matmul %75, %73, %cst_50 {dimension_numbers = #tpu.dot_dimension_numbers<[1], [0], [0], [1], [0, 0, 1, 1], [], []>} : vector<32x32xf32>, vector<32x128xf32>, vector<32x128xf32> -> vector<32x128xf32>
    %c6_51 = arith.constant 6 : index
    %c0_52 = arith.constant 0 : index
    %c0_53 = arith.constant 0 : index
    %77 = vector.load %arg3[%c6_51, %c0_52, %c0_53] : memref<8x32x1xf32, #tpu.memory_space<vmem>>, vector<1x32x1xf32>
    %78 = vector.shape_cast %77 : vector<1x32x1xf32> to vector<32x1xf32>
    %79 = vector.broadcast %78 : vector<32x1xf32> to vector<32x128xf32>
    %80 = arith.addf %76, %79 : vector<32x128xf32>
    %cst_54 = arith.constant 0.000000e+00 : f32
    %81 = vector.broadcast %cst_54 : f32 to vector<32x128xf32>
    %82 = arith.maximumf %80, %81 : vector<32x128xf32>
    %c7 = arith.constant 7 : index
    %c0_55 = arith.constant 0 : index
    %c0_56 = arith.constant 0 : index
    %83 = vector.load %arg2[%c7, %c0_55, %c0_56] : memref<8x32x32xf32, #tpu.memory_space<vmem>>, vector<1x32x32xf32>
    %84 = vector.shape_cast %83 : vector<1x32x32xf32> to vector<32x32xf32>
    %cst_57 = arith.constant dense<0.000000e+00> : vector<32x128xf32>
    %85 = tpu.matmul %84, %82, %cst_57 {dimension_numbers = #tpu.dot_dimension_numbers<[1], [0], [0], [1], [0, 0, 1, 1], [], []>} : vector<32x32xf32>, vector<32x128xf32>, vector<32x128xf32> -> vector<32x128xf32>
    %c7_58 = arith.constant 7 : index
    %c0_59 = arith.constant 0 : index
    %c0_60 = arith.constant 0 : index
    %86 = vector.load %arg3[%c7_58, %c0_59, %c0_60] : memref<8x32x1xf32, #tpu.memory_space<vmem>>, vector<1x32x1xf32>
    %87 = vector.shape_cast %86 : vector<1x32x1xf32> to vector<32x1xf32>
    %88 = vector.broadcast %87 : vector<32x1xf32> to vector<32x128xf32>
    %89 = arith.addf %85, %88 : vector<32x128xf32>
    %90 = vector.extract_strided_slice %89 {offsets = [0, 0], sizes = [1, 128], strides = [1, 1]} : vector<32x128xf32> to vector<1x128xf32>
    %cst_61 = arith.constant 0.000000e+00 : f32
    %91 = vector.broadcast %cst_61 : f32 to vector<3x128xf32>
    %92 = tpu.concatenate %90, %35, %39, %91 in 0 : vector<1x128xf32>, vector<2x128xf32>, vector<2x128xf32>, vector<3x128xf32> -> vector<8x128xf32>
    %c0_62 = arith.constant 0 : index
    %c0_63 = arith.constant 0 : index
    %93 = vector.load %arg4[%c0_62, %c0_63] : memref<8x128xf32, #tpu.memory_space<vmem>>, vector<8x128xf32>
    tpu.vector_store %arg4[%c0_62, %c0_63], %92 {strides = array<i32>} : memref<8x128xf32, #tpu.memory_space<vmem>>, vector<8x128xf32>,
    return
  }
  func.func @transform_0(%arg0: i32) -> (i32, i32) {
    %c0_i32 = arith.constant 0 : i32
    %c0_i32_0 = arith.constant 0 : i32
    return %c0_i32, %arg0 : i32, i32
  }
  func.func @transform_1(%arg0: i32) -> (i32, i32, i32) {
    %c0_i32 = arith.constant 0 : i32
    %c0_i32_0 = arith.constant 0 : i32
    %c0_i32_1 = arith.constant 0 : i32
    %c0_i32_2 = arith.constant 0 : i32
    return %c0_i32, %c0_i32_0, %c0_i32_1 : i32, i32, i32
  }
  func.func @transform_2(%arg0: i32) -> (i32, i32, i32) {
    %c0_i32 = arith.constant 0 : i32
    %c0_i32_0 = arith.constant 0 : i32
    %c0_i32_1 = arith.constant 0 : i32
    %c0_i32_2 = arith.constant 0 : i32
    return %c0_i32, %c0_i32_0, %c0_i32_1 : i32, i32, i32
  }
  func.func @transform_3(%arg0: i32) -> (i32, i32) {
    %c0_i32 = arith.constant 0 : i32
    %c0_i32_0 = arith.constant 0 : i32
    return %c0_i32, %arg0 : i32, i32
  }
}

</mosaic_0001>

<llo_original>
// kernel: tpu_custom_call.1
$region0: #{tpu_custom_call.1}
  #allocation0 [shape = 'u32[]', space=smem, size = 0x4, offset = 0x4, fixed_abs, tag = 'smem constant byte address 0x4 - core index']
  #allocation1 [shape = 'u32[144,128]{1,0:T(1,128)}', space=vmem, size = 0x12000, scoped, tag = 'internal scratch']
  %s0 = inlined_call_operand.hbm [shape: f32[32,128], index: 0, kind: input, shape index: {}]
  %s1 = inlined_call_operand.vmem [shape: f32[8,32,32], index: 1, kind: input, shape index: {}]
  %s2 = inlined_call_operand.vmem [shape: f32[8,32,1], index: 2, kind: input, shape index: {}]
  %s3 = inlined_call_operand.hbm [shape: f32[8,128], index: 3, kind: output, shape index: {}]
  %s4 = sld [smem:[#allocation0]]
  $region26: #{tpu_custom_call.1} parent=0
    _
  %s6 = ssub.s32 1, %s4
  %s7 = scalar_select 0, %s6, %s4
  $region1: #{tpu_custom_call.1} parent=0
    #allocation2 [shape = 'u8[16384]{0}', space=vmem, size = 0x4000, scoped, tag = 'input window, operand 0, single buffered']
    #allocation3 [shape = 's32[1]{0}', space=sflag, size = 0x4, scoped, tag = 'scoped memory for tpu_custom_call.1']
    #allocation4 [shape = 's32[1]{0}', space=sflag, size = 0x4, scoped, tag = 'scoped memory for tpu_custom_call.1']
    #allocation5 [shape = 'u8[4096]{0}', space=vmem, size = 0x1000, scoped, tag = 'output window, operand 0, single buffered']
    %8 = vsyncpa [#allocation3], 0
    %9 = vsyncpa [#allocation4], 0
    // Predicated region
    $region2: #{tpu_custom_call.1} parent=1 // pred_check
      _
    $region3: #{tpu_custom_call.1} parent=1 // pred_check_branch
      %11 = sbr.rel (0) target = $region5
    $region4: #{tpu_custom_call.1} parent=1 // pred_region
      %s13 = ssub.s32 512, 512
      %14 = vsyncadd [#allocation3], %s13
      %s15 = sshll.u32 [#allocation2], 4
      %s16 = int_to_ptr.vmem [resolvable:$true] %s15
      %21 = dma.hbm_to_vmem [thread:$0]  %s0, 512, %s16, [#allocation3], 128, 128, 8
    $region5: #{tpu_custom_call.1} parent=1 // pred_fallthru
      _
    // Predicated region
    $region6: #{tpu_custom_call.1} parent=1 // pred_check
      _
    $region7: #{tpu_custom_call.1} parent=1 // pred_check_branch
      %23 = sbr.rel (0) target = $region9
    $region8: #{tpu_custom_call.1} parent=1 // pred_region
      _
    $region9: #{tpu_custom_call.1} parent=1 // pred_fallthru
      _
    // Predicated region
    $region10: #{tpu_custom_call.1} parent=1 // pred_check
      _
    $region11: #{tpu_custom_call.1} parent=1 // pred_check_branch
      %25 = sbr.rel (0) target = $region13
    $region12: #{tpu_custom_call.1} parent=1 // pred_region
      _
    $region13: #{tpu_custom_call.1} parent=1 // pred_fallthru
      _
    // Predicated region
    $region14: #{tpu_custom_call.1} parent=1 // pred_check
      _
    $region15: #{tpu_custom_call.1} parent=1 // pred_check_branch
      %27 = sbr.rel (0) target = $region17
    $region16: #{tpu_custom_call.1} parent=1 // pred_region
      %28 = dma.done [#allocation3], 512
    $region17: #{tpu_custom_call.1} parent=1 // pred_fallthru
      _
    %v29 = vld [vmem:[#allocation2] sm:$0xff]
    %v30 = vld [vmem:[#allocation2 + $0x8] sm:$0xff]
    %v31 = vld [vmem:[#allocation2 + $0x10] sm:$0xff]
    %v32 = vld [vmem:[#allocation2 + $0x18] sm:$0xff]
    %v33 = vld [vmem:[%s1] sm:$0xff]
    %v34 = vld [vmem:[%s1 + $0x8] sm:$0xff]
    %v35 = vld [vmem:[%s1 + $0x10] sm:$0xff]
    %v36 = vld [vmem:[%s1 + $0x18] sm:$0xff]
    %v37 = vld [vmem:[%s2] sm:$0xff]
    %v38 = vld [vmem:[%s2 + $0x8] sm:$0xff]
    %v39 = vld [vmem:[%s2 + $0x10] sm:$0xff]
    %v40 = vld [vmem:[%s2 + $0x18] sm:$0xff]
    %42 = vset.pattern.permute.xlu0 0
    %43 = vperm.xlu0 %42, %v37
    %v44 = vpop.permute.xlu0 %43
    %47 = vset.pattern.permute.xlu0 0
    %48 = vperm.xlu0 %47, %v38
    %v49 = vpop.permute.xlu0 %48
    %52 = vset.pattern.permute.xlu0 0
    %53 = vperm.xlu0 %52, %v39
    %v54 = vpop.permute.xlu0 %53
    %57 = vset.pattern.permute.xlu0 0
    %58 = vperm.xlu0 %57, %v40
    %v59 = vpop.permute.xlu0 %58
    %vm61 = vcmask 261120
    %v63 = vsel %vm61, %v33, 0
    %v66 = vsel %vm61, %v34, 0
    %v69 = vsel %vm61, %v35, 0
    %v72 = vsel %vm61, %v36, 0
    %74 = vmatprep.subr.mxu0 0.0
    %75 = vmatpush1.msra.mxu0 0.0
    %76 = vmatprep.subr.mxu0 0.0
    %77 = vmatpush1.msra.mxu0 0.0
    %78 = vmatprep.subr.mxu0 0.0
    %79 = vmatpush1.msra.mxu0 0.0
    %80 = vmatprep.subr.mxu0 0.0
    %81 = vmatpush1.msra.mxu0 0.0
    %82 = vmatprep.subr.mxu0 0.0
    %83 = vmatpush1.msra.mxu0 0.0
    %84 = vmatprep.subr.mxu0 0.0
    %85 = vmatpush1.msra.mxu0 0.0
    %86 = vmatprep.subr.mxu0 0.0
    %87 = vmatpush1.msra.mxu0 0.0
    %88 = vmatprep.subr.mxu0 0.0
    %89 = vmatpush1.msra.mxu0 0.0
    %90 = vmatprep.subr.mxu0 0.0
    %91 = vmatpush1.msra.mxu0 0.0
    %92 = vmatprep.subr.mxu0 0.0
    %93 = vmatpush1.msra.mxu0 0.0
    %94 = vmatprep.subr.mxu0 0.0
    %95 = vmatpush1.msra.mxu0 0.0
    %96 = vmatprep.subr.mxu0 0.0
    %97 = vmatpush1.msra.mxu0 0.0
    %98 = vmatprep.subr.mxu0 0.0
    %99 = vmatpush1.msra.mxu0 %v32
    %100 = vmatprep.subr.mxu0 0.0
    %101 = vmatpush1.msra.mxu0 %v31
    %102 = vmatprep.subr.mxu0 0.0
    %103 = vmatpush1.msra.mxu0 %v30
    %104 = vmatprep.subr.mxu0 0.0
    %105 = vmatpush1.msra.mxu0 %v29
    %106 = vmatprep.subr.mxu0 0.0
    %107 = vmatpush2.msra.mxu0 0.0
    %108 = vmatprep.subr.mxu0 0.0
    %109 = vmatpush2.msra.mxu0 0.0
    %110 = vmatprep.subr.mxu0 0.0
    %111 = vmatpush2.msra.mxu0 0.0
    %112 = vmatprep.subr.mxu0 0.0
    %113 = vmatpush2.msra.mxu0 0.0
    %114 = vmatprep.subr.mxu0 0.0
    %115 = vmatpush2.msra.mxu0 0.0
    %116 = vmatprep.subr.mxu0 0.0
    %117 = vmatpush2.msra.mxu0 0.0
    %118 = vmatprep.subr.mxu0 0.0
    %119 = vmatpush2.msra.mxu0 0.0
    %120 = vmatprep.subr.mxu0 0.0
    %121 = vmatpush2.msra.mxu0 0.0
    %122 = vmatprep.subr.mxu0 0.0
    %123 = vmatpush2.msra.mxu0 0.0
    %124 = vmatprep.subr.mxu0 0.0
    %125 = vmatpush2.msra.mxu0 0.0
    %126 = vmatprep.subr.mxu0 0.0
    %127 = vmatpush2.msra.mxu0 0.0
    %128 = vmatprep.subr.mxu0 0.0
    %129 = vmatpush2.msra.mxu0 0.0
    %130 = vmatprep.subr.mxu0 0.0
    %131 = vmatpush2.msra.mxu0 0.0
    %132 = vmatprep.subr.mxu0 0.0
    %133 = vmatpush2.msra.mxu0 0.0
    %134 = vmatprep.subr.mxu0 0.0
    %135 = vmatpush2.msra.mxu0 0.0
    %136 = vmatprep.subr.mxu0 0.0
    %137 = vmatpush2.msra.mxu0 0.0
    %138 = vmatprep.mubr.f32.mxu0 0.0
    %139 = vmatmul.mubr.f32.gmra.mxu0 %v63
    %v140 = vpop.f32.mrf.mxu0
    %v141 = vadd.f32 %v44, %v140
    %v142 = vpop.f32.mrf.mxu0
    %143 = vmatprep.mubr.f32.mxu0 0.0
    %144 = vmatmul.mubr.f32.gmra.mxu0 %v66
    %v145 = vpop.f32.mrf.mxu0
    %v146 = vadd.f32 %v49, %v145
    %v147 = vpop.f32.mrf.mxu0
    %148 = vmatprep.mubr.f32.mxu0 0.0
    %149 = vmatmul.mubr.f32.gmra.mxu0 %v69
    %v150 = vpop.f32.mrf.mxu0
    %v151 = vadd.f32 %v54, %v150
    %v152 = vpop.f32.mrf.mxu0
    %153 = vmatprep.mubr.f32.mxu0 0.0
    %154 = vmatmul.mubr.f32.gmra.mxu0 %v72
    %v155 = vpop.f32.mrf.mxu0
    %v156 = vadd.f32 %v59, %v155
    %v157 = vpop.f32.mrf.mxu0
    %158 = vdwg.mxu0
    %v159 = vmax.f32 %v141, 0.0
    %v160 = vmax.f32 %v146, 0.0
    %v161 = vmax.f32 %v151, 0.0
    %v162 = vmax.f32 %v156, 0.0
    %s163 = scalar_lea.vmem %s1, 32
    %v164 = vld [vmem:[%s163] sm:$0xff]
    %v165 = vld [vmem:[%s163 + $0x8] sm:$0xff]
    %v166 = vld [vmem:[%s163 + $0x10] sm:$0xff]
    %v167 = vld [vmem:[%s163 + $0x18] sm:$0xff]
    %s168 = scalar_lea.vmem %s2, 32
    %v169 = vld [vmem:[%s168] sm:$0xff]
    %v170 = vld [vmem:[%s168 + $0x8] sm:$0xff]
    %v171 = vld [vmem:[%s168 + $0x10] sm:$0xff]
    %v172 = vld [vmem:[%s168 + $0x18] sm:$0xff]
    %174 = vset.pattern.permute.xlu0 0
    %175 = vperm.xlu0 %174, %v169
    %v176 = vpop.permute.xlu0 %175
    %179 = vset.pattern.permute.xlu0 0
    %180 = vperm.xlu0 %179, %v170
    %v181 = vpop.permute.xlu0 %180
    %184 = vset.pattern.permute.xlu0 0
    %185 = vperm.xlu0 %184, %v171
    %v186 = vpop.permute.xlu0 %185
    %189 = vset.pattern.permute.xlu0 0
    %190 = vperm.xlu0 %189, %v172
    %v191 = vpop.permute.xlu0 %190
    %v194 = vsel %vm61, %v164, 0
    %v197 = vsel %vm61, %v165, 0
    %v200 = vsel %vm61, %v166, 0
    %v203 = vsel %vm61, %v167, 0
    %205 = vmatprep.subr.mxu0 0.0
    %206 = vmatpush1.msra.mxu0 0.0
    %207 = vmatprep.subr.mxu0 0.0
    %208 = vmatpush1.msra.mxu0 0.0
    %209 = vmatprep.subr.mxu0 0.0
    %210 = vmatpush1.msra.mxu0 0.0
    %211 = vmatprep.subr.mxu0 0.0
    %212 = vmatpush1.msra.mxu0 0.0
    %213 = vmatprep.subr.mxu0 0.0
    %214 = vmatpush1.msra.mxu0 0.0
    %215 = vmatprep.subr.mxu0 0.0
    %216 = vmatpush1.msra.mxu0 0.0
    %217 = vmatprep.subr.mxu0 0.0
    %218 = vmatpush1.msra.mxu0 0.0
    %219 = vmatprep.subr.mxu0 0.0
    %220 = vmatpush1.msra.mxu0 0.0
    %221 = vmatprep.subr.mxu0 0.0
    %222 = vmatpush1.msra.mxu0 0.0
    %223 = vmatprep.subr.mxu0 0.0
    %224 = vmatpush1.msra.mxu0 0.0
    %225 = vmatprep.subr.mxu0 0.0
    %226 = vmatpush1.msra.mxu0 0.0
    %227 = vmatprep.subr.mxu0 0.0
    %228 = vmatpush1.msra.mxu0 0.0
    %229 = vmatprep.subr.mxu0 0.0
    %230 = vmatpush1.msra.mxu0 %v162
    %231 = vmatprep.subr.mxu0 0.0
    %232 = vmatpush1.msra.mxu0 %v161
    %233 = vmatprep.subr.mxu0 0.0
    %234 = vmatpush1.msra.mxu0 %v160
    %235 = vmatprep.subr.mxu0 0.0
    %236 = vmatpush1.msra.mxu0 %v159
    %237 = vmatprep.subr.mxu0 0.0
    %238 = vmatpush2.msra.mxu0 0.0
    %239 = vmatprep.subr.mxu0 0.0
    %240 = vmatpush2.msra.mxu0 0.0
    %241 = vmatprep.subr.mxu0 0.0
    %242 = vmatpush2.msra.mxu0 0.0
    %243 = vmatprep.subr.mxu0 0.0
    %244 = vmatpush2.msra.mxu0 0.0
    %245 = vmatprep.subr.mxu0 0.0
    %246 = vmatpush2.msra.mxu0 0.0
    %247 = vmatprep.subr.mxu0 0.0
    %248 = vmatpush2.msra.mxu0 0.0
    %249 = vmatprep.subr.mxu0 0.0
    %250 = vmatpush2.msra.mxu0 0.0
    %251 = vmatprep.subr.mxu0 0.0
    %252 = vmatpush2.msra.mxu0 0.0
    %253 = vmatprep.subr.mxu0 0.0
    %254 = vmatpush2.msra.mxu0 0.0
    %255 = vmatprep.subr.mxu0 0.0
    %256 = vmatpush2.msra.mxu0 0.0
    %257 = vmatprep.subr.mxu0 0.0
    %258 = vmatpush2.msra.mxu0 0.0
    %259 = vmatprep.subr.mxu0 0.0
    %260 = vmatpush2.msra.mxu0 0.0
    %261 = vmatprep.subr.mxu0 0.0
    %262 = vmatpush2.msra.mxu0 0.0
    %263 = vmatprep.subr.mxu0 0.0
    %264 = vmatpush2.msra.mxu0 0.0
    %265 = vmatprep.subr.mxu0 0.0
    %266 = vmatpush2.msra.mxu0 0.0
    %267 = vmatprep.subr.mxu0 0.0
    %268 = vmatpush2.msra.mxu0 0.0
    %269 = vmatprep.mubr.f32.mxu0 0.0
    %270 = vmatmul.mubr.f32.gmra.mxu0 %v194
    %v271 = vpop.f32.mrf.mxu0
    %v272 = vadd.f32 %v176, %v271
    %v273 = vpop.f32.mrf.mxu0
    %274 = vmatprep.mubr.f32.mxu0 0.0
    %275 = vmatmul.mubr.f32.gmra.mxu0 %v197
    %v276 = vpop.f32.mrf.mxu0
    %v277 = vadd.f32 %v181, %v276
    %v278 = vpop.f32.mrf.mxu0
    %279 = vmatprep.mubr.f32.mxu0 0.0
    %280 = vmatmul.mubr.f32.gmra.mxu0 %v200
    %v281 = vpop.f32.mrf.mxu0
    %v282 = vadd.f32 %v186, %v281
    %v283 = vpop.f32.mrf.mxu0
    %284 = vmatprep.mubr.f32.mxu0 0.0
    %285 = vmatmul.mubr.f32.gmra.mxu0 %v203
    %v286 = vpop.f32.mrf.mxu0
    %v287 = vadd.f32 %v191, %v286
    %v288 = vpop.f32.mrf.mxu0
    %289 = vdwg.mxu0
    %v290 = vmax.f32 %v272, 0.0
    %v291 = vmax.f32 %v277, 0.0
    %v292 = vmax.f32 %v282, 0.0
    %v293 = vmax.f32 %v287, 0.0
    %s294 = scalar_lea.vmem %s1, 64
    %v295 = vld [vmem:[%s294] sm:$0xff]
    %v296 = vld [vmem:[%s294 + $0x8] sm:$0xff]
    %v297 = vld [vmem:[%s294 + $0x10] sm:$0xff]
    %v298 = vld [vmem:[%s294 + $0x18] sm:$0xff]
    %s299 = scalar_lea.vmem %s2, 64
    %v300 = vld [vmem:[%s299] sm:$0xff]
    %v301 = vld [vmem:[%s299 + $0x8] sm:$0xff]
    %v302 = vld [vmem:[%s299 + $0x10] sm:$0xff]
    %v303 = vld [vmem:[%s299 + $0x18] sm:$0xff]
    %305 = vset.pattern.permute.xlu0 0
    %306 = vperm.xlu0 %305, %v300
    %v307 = vpop.permute.xlu0 %306
    %310 = vset.pattern.permute.xlu0 0
    %311 = vperm.xlu0 %310, %v301
    %v312 = vpop.permute.xlu0 %311
    %315 = vset.pattern.permute.xlu0 0
    %316 = vperm.xlu0 %315, %v302
    %v317 = vpop.permute.xlu0 %316
    %320 = vset.pattern.permute.xlu0 0
    %321 = vperm.xlu0 %320, %v303
    %v322 = vpop.permute.xlu0 %321
    %v325 = vsel %vm61, %v295, 0
    %v328 = vsel %vm61, %v296, 0
    %v331 = vsel %vm61, %v297, 0
    %v334 = vsel %vm61, %v298, 0
    %336 = vmatprep.subr.mxu0 0.0
    %337 = vmatpush1.msra.mxu0 0.0
    %338 = vmatprep.subr.mxu0 0.0
    %339 = vmatpush1.msra.mxu0 0.0
    %340 = vmatprep.subr.mxu0 0.0
    %341 = vmatpush1.msra.mxu0 0.0
    %342 = vmatprep.subr.mxu0 0.0
    %343 = vmatpush1.msra.mxu0 0.0
    %344 = vmatprep.subr.mxu0 0.0
    %345 = vmatpush1.msra.mxu0 0.0
    %346 = vmatprep.subr.mxu0 0.0
    %347 = vmatpush1.msra.mxu0 0.0
    %348 = vmatprep.subr.mxu0 0.0
    %349 = vmatpush1.msra.mxu0 0.0
    %350 = vmatprep.subr.mxu0 0.0
    %351 = vmatpush1.msra.mxu0 0.0
    %352 = vmatprep.subr.mxu0 0.0
    %353 = vmatpush1.msra.mxu0 0.0
    %354 = vmatprep.subr.mxu0 0.0
    %355 = vmatpush1.msra.mxu0 0.0
    %356 = vmatprep.subr.mxu0 0.0
    %357 = vmatpush1.msra.mxu0 0.0
    %358 = vmatprep.subr.mxu0 0.0
    %359 = vmatpush1.msra.mxu0 0.0
    %360 = vmatprep.subr.mxu0 0.0
    %361 = vmatpush1.msra.mxu0 %v293
    %362 = vmatprep.subr.mxu0 0.0
    %363 = vmatpush1.msra.mxu0 %v292
    %364 = vmatprep.subr.mxu0 0.0
    %365 = vmatpush1.msra.mxu0 %v291
    %366 = vmatprep.subr.mxu0 0.0
    %367 = vmatpush1.msra.mxu0 %v290
    %368 = vmatprep.subr.mxu0 0.0
    %369 = vmatpush2.msra.mxu0 0.0
    %370 = vmatprep.subr.mxu0 0.0
    %371 = vmatpush2.msra.mxu0 0.0
    %372 = vmatprep.subr.mxu0 0.0
    %373 = vmatpush2.msra.mxu0 0.0
    %374 = vmatprep.subr.mxu0 0.0
    %375 = vmatpush2.msra.mxu0 0.0
    %376 = vmatprep.subr.mxu0 0.0
    %377 = vmatpush2.msra.mxu0 0.0
    %378 = vmatprep.subr.mxu0 0.0
    %379 = vmatpush2.msra.mxu0 0.0
    %380 = vmatprep.subr.mxu0 0.0
    %381 = vmatpush2.msra.mxu0 0.0
    %382 = vmatprep.subr.mxu0 0.0
    %383 = vmatpush2.msra.mxu0 0.0
    %384 = vmatprep.subr.mxu0 0.0
    %385 = vmatpush2.msra.mxu0 0.0
    %386 = vmatprep.subr.mxu0 0.0
    %387 = vmatpush2.msra.mxu0 0.0
    %388 = vmatprep.subr.mxu0 0.0
    %389 = vmatpush2.msra.mxu0 0.0
    %390 = vmatprep.subr.mxu0 0.0
    %391 = vmatpush2.msra.mxu0 0.0
    %392 = vmatprep.subr.mxu0 0.0
    %393 = vmatpush2.msra.mxu0 0.0
    %394 = vmatprep.subr.mxu0 0.0
    %395 = vmatpush2.msra.mxu0 0.0
    %396 = vmatprep.subr.mxu0 0.0
    %397 = vmatpush2.msra.mxu0 0.0
    %398 = vmatprep.subr.mxu0 0.0
    %399 = vmatpush2.msra.mxu0 0.0
    %400 = vmatprep.mubr.f32.mxu0 0.0
    %401 = vmatmul.mubr.f32.gmra.mxu0 %v325
    %v402 = vpop.f32.mrf.mxu0
    %v403 = vadd.f32 %v307, %v402
    %v404 = vpop.f32.mrf.mxu0
    %405 = vmatprep.mubr.f32.mxu0 0.0
    %406 = vmatmul.mubr.f32.gmra.mxu0 %v328
    %v407 = vpop.f32.mrf.mxu0
    %v408 = vadd.f32 %v312, %v407
    %v409 = vpop.f32.mrf.mxu0
    %410 = vmatprep.mubr.f32.mxu0 0.0
    %411 = vmatmul.mubr.f32.gmra.mxu0 %v331
    %v412 = vpop.f32.mrf.mxu0
    %v413 = vadd.f32 %v317, %v412
    %v414 = vpop.f32.mrf.mxu0
    %415 = vmatprep.mubr.f32.mxu0 0.0
    %416 = vmatmul.mubr.f32.gmra.mxu0 %v334
    %v417 = vpop.f32.mrf.mxu0
    %v418 = vadd.f32 %v322, %v417
    %v419 = vpop.f32.mrf.mxu0
    %420 = vdwg.mxu0
    %v421 = vmax.f32 %v403, 0.0
    %v422 = vmax.f32 %v408, 0.0
    %v423 = vmax.f32 %v413, 0.0
    %v424 = vmax.f32 %v418, 0.0
    %s425 = scalar_lea.vmem %s1, 96
    %v426 = vld [vmem:[%s425] sm:$0xff]
    %v427 = vld [vmem:[%s425 + $0x8] sm:$0xff]
    %v428 = vld [vmem:[%s425 + $0x10] sm:$0xff]
    %v429 = vld [vmem:[%s425 + $0x18] sm:$0xff]
    %s430 = scalar_lea.vmem %s2, 96
    %v431 = vld [vmem:[%s430] sm:$0xff]
    %v432 = vld [vmem:[%s430 + $0x8] sm:$0xff]
    %v433 = vld [vmem:[%s430 + $0x10] sm:$0xff]
    %v434 = vld [vmem:[%s430 + $0x18] sm:$0xff]
    %436 = vset.pattern.permute.xlu0 0
    %437 = vperm.xlu0 %436, %v431
    %v438 = vpop.permute.xlu0 %437
    %441 = vset.pattern.permute.xlu0 0
    %442 = vperm.xlu0 %441, %v432
    %v443 = vpop.permute.xlu0 %442
    %446 = vset.pattern.permute.xlu0 0
    %447 = vperm.xlu0 %446, %v433
    %v448 = vpop.permute.xlu0 %447
    %450 = vset.pattern.permute.xlu0 0
    %451 = vperm.xlu0 %450, %v434
    %v452 = vpop.permute.xlu0 %451
    %v454 = vsel %vm61, %v426, 0
    %v457 = vsel %vm61, %v427, 0
    %v460 = vsel %vm61, %v428, 0
    %v463 = vsel %vm61, %v429, 0
    %465 = vmatprep.subr.mxu0 0.0
    %466 = vmatpush1.msra.mxu0 0.0
    %467 = vmatprep.subr.mxu0 0.0
    %468 = vmatpush1.msra.mxu0 0.0
    %469 = vmatprep.subr.mxu0 0.0
    %470 = vmatpush1.msra.mxu0 0.0
    %471 = vmatprep.subr.mxu0 0.0
    %472 = vmatpush1.msra.mxu0 0.0
    %473 = vmatprep.subr.mxu0 0.0
    %474 = vmatpush1.msra.mxu0 0.0
    %475 = vmatprep.subr.mxu0 0.0
    %476 = vmatpush1.msra.mxu0 0.0
    %477 = vmatprep.subr.mxu0 0.0
    %478 = vmatpush1.msra.mxu0 0.0
    %479 = vmatprep.subr.mxu0 0.0
    %480 = vmatpush1.msra.mxu0 0.0
    %481 = vmatprep.subr.mxu0 0.0
    %482 = vmatpush1.msra.mxu0 0.0
    %483 = vmatprep.subr.mxu0 0.0
    %484 = vmatpush1.msra.mxu0 0.0
    %485 = vmatprep.subr.mxu0 0.0
    %486 = vmatpush1.msra.mxu0 0.0
    %487 = vmatprep.subr.mxu0 0.0
    %488 = vmatpush1.msra.mxu0 0.0
    %489 = vmatprep.subr.mxu0 0.0
    %490 = vmatpush1.msra.mxu0 %v424
    %491 = vmatprep.subr.mxu0 0.0
    %492 = vmatpush1.msra.mxu0 %v423
    %493 = vmatprep.subr.mxu0 0.0
    %494 = vmatpush1.msra.mxu0 %v422
    %495 = vmatprep.subr.mxu0 0.0
    %496 = vmatpush1.msra.mxu0 %v421
    %497 = vmatprep.subr.mxu0 0.0
    %498 = vmatpush2.msra.mxu0 0.0
    %499 = vmatprep.subr.mxu0 0.0
    %500 = vmatpush2.msra.mxu0 0.0
    %501 = vmatprep.subr.mxu0 0.0
    %502 = vmatpush2.msra.mxu0 0.0
    %503 = vmatprep.subr.mxu0 0.0
    %504 = vmatpush2.msra.mxu0 0.0
    %505 = vmatprep.subr.mxu0 0.0
    %506 = vmatpush2.msra.mxu0 0.0
    %507 = vmatprep.subr.mxu0 0.0
    %508 = vmatpush2.msra.mxu0 0.0
    %509 = vmatprep.subr.mxu0 0.0
    %510 = vmatpush2.msra.mxu0 0.0
    %511 = vmatprep.subr.mxu0 0.0
    %512 = vmatpush2.msra.mxu0 0.0
    %513 = vmatprep.subr.mxu0 0.0
    %514 = vmatpush2.msra.mxu0 0.0
    %515 = vmatprep.subr.mxu0 0.0
    %516 = vmatpush2.msra.mxu0 0.0
    %517 = vmatprep.subr.mxu0 0.0
    %518 = vmatpush2.msra.mxu0 0.0
    %519 = vmatprep.subr.mxu0 0.0
    %520 = vmatpush2.msra.mxu0 0.0
    %521 = vmatprep.subr.mxu0 0.0
    %522 = vmatpush2.msra.mxu0 0.0
    %523 = vmatprep.subr.mxu0 0.0
    %524 = vmatpush2.msra.mxu0 0.0
    %525 = vmatprep.subr.mxu0 0.0
    %526 = vmatpush2.msra.mxu0 0.0
    %527 = vmatprep.subr.mxu0 0.0
    %528 = vmatpush2.msra.mxu0 0.0
    %529 = vmatprep.mubr.f32.mxu0 0.0
    %530 = vmatmul.mubr.f32.gmra.mxu0 %v454
    %v531 = vpop.f32.mrf.mxu0
    %v532 = vadd.f32 %v438, %v531
    %v533 = vpop.f32.mrf.mxu0
    %534 = vmatprep.mubr.f32.mxu0 0.0
    %535 = vmatmul.mubr.f32.gmra.mxu0 %v457
    %v536 = vpop.f32.mrf.mxu0
    %v537 = vadd.f32 %v443, %v536
    %v538 = vpop.f32.mrf.mxu0
    %539 = vmatprep.mubr.f32.mxu0 0.0
    %540 = vmatmul.mubr.f32.gmra.mxu0 %v460
    %v541 = vpop.f32.mrf.mxu0
    %v542 = vpop.f32.mrf.mxu0
    %543 = vmatprep.mubr.f32.mxu0 0.0
    %544 = vmatmul.mubr.f32.gmra.mxu0 %v463
    %v545 = vpop.f32.mrf.mxu0
    %v546 = vpop.f32.mrf.mxu0
    %547 = vdwg.mxu0
    %v548 = vtanh.pop %v537
    %v549 = vmul.f32 %v548, 5.0
    %v550 = vmul.f32 %v549, 1.442695
    %v551 = vpow.pop %v550
    %v553 = vrot.slane %v32, 1
    %v555 = vmul.f32 %v551, %v553
    %v556 = vadd.f32 %v532, %v555
    %v557 = vsub.f32 %v32, 10.0
    %v558 = vmul.f32 %v557, 0.0028169013
    %v559 = vmul.f32 %v557, 0.0125
    %v561 = vrot.slane %v558, 1
    %v564 = vrot.slane %v559, 1
    %vm566 = vcmask 1041408
    %v567 = vsel %vm566, %v556, %v561
    %vm568 = vcmask 1042432
    %v569 = vsel %vm568, %v567, %v564
    %vm570 = vcmask 1043456
    %v571 = vsel %vm570, %v569, 0.0
    %s572 = scalar_lea.vmem %s1, 128
    %v573 = vld [vmem:[%s572] sm:$0xff]
    %v574 = vld [vmem:[%s572 + $0x8] sm:$0xff]
    %v575 = vld [vmem:[%s572 + $0x10] sm:$0xff]
    %v576 = vld [vmem:[%s572 + $0x18] sm:$0xff]
    %s577 = scalar_lea.vmem %s2, 128
    %v578 = vld [vmem:[%s577] sm:$0xff]
    %v579 = vld [vmem:[%s577 + $0x8] sm:$0xff]
    %v580 = vld [vmem:[%s577 + $0x10] sm:$0xff]
    %v581 = vld [vmem:[%s577 + $0x18] sm:$0xff]
    %583 = vset.pattern.permute.xlu0 0
    %584 = vperm.xlu0 %583, %v578
    %v585 = vpop.permute.xlu0 %584
    %588 = vset.pattern.permute.xlu0 0
    %589 = vperm.xlu0 %588, %v579
    %v590 = vpop.permute.xlu0 %589
    %593 = vset.pattern.permute.xlu0 0
    %594 = vperm.xlu0 %593, %v580
    %v595 = vpop.permute.xlu0 %594
    %598 = vset.pattern.permute.xlu0 0
    %599 = vperm.xlu0 %598, %v581
    %v600 = vpop.permute.xlu0 %599
    %v603 = vsel %vm61, %v573, 0
    %v606 = vsel %vm61, %v574, 0
    %v609 = vsel %vm61, %v575, 0
    %v612 = vsel %vm61, %v576, 0
    %614 = vmatprep.subr.mxu0 0.0
    %615 = vmatpush1.msra.mxu0 0.0
    %616 = vmatprep.subr.mxu0 0.0
    %617 = vmatpush1.msra.mxu0 0.0
    %618 = vmatprep.subr.mxu0 0.0
    %619 = vmatpush1.msra.mxu0 0.0
    %620 = vmatprep.subr.mxu0 0.0
    %621 = vmatpush1.msra.mxu0 0.0
    %622 = vmatprep.subr.mxu0 0.0
    %623 = vmatpush1.msra.mxu0 0.0
    %624 = vmatprep.subr.mxu0 0.0
    %625 = vmatpush1.msra.mxu0 0.0
    %626 = vmatprep.subr.mxu0 0.0
    %627 = vmatpush1.msra.mxu0 0.0
    %628 = vmatprep.subr.mxu0 0.0
    %629 = vmatpush1.msra.mxu0 0.0
    %630 = vmatprep.subr.mxu0 0.0
    %631 = vmatpush1.msra.mxu0 0.0
    %632 = vmatprep.subr.mxu0 0.0
    %633 = vmatpush1.msra.mxu0 0.0
    %634 = vmatprep.subr.mxu0 0.0
    %635 = vmatpush1.msra.mxu0 0.0
    %636 = vmatprep.subr.mxu0 0.0
    %637 = vmatpush1.msra.mxu0 0.0
    %638 = vmatprep.subr.mxu0 0.0
    %639 = vmatpush1.msra.mxu0 0.0
    %640 = vmatprep.subr.mxu0 0.0
    %641 = vmatpush1.msra.mxu0 0.0
    %642 = vmatprep.subr.mxu0 0.0
    %643 = vmatpush1.msra.mxu0 0.0
    %644 = vmatprep.subr.mxu0 0.0
    %645 = vmatpush1.msra.mxu0 %v571
    %646 = vmatprep.subr.mxu0 0.0
    %647 = vmatpush2.msra.mxu0 0.0
    %648 = vmatprep.subr.mxu0 0.0
    %649 = vmatpush2.msra.mxu0 0.0
    %650 = vmatprep.subr.mxu0 0.0
    %651 = vmatpush2.msra.mxu0 0.0
    %652 = vmatprep.subr.mxu0 0.0
    %653 = vmatpush2.msra.mxu0 0.0
    %654 = vmatprep.subr.mxu0 0.0
    %655 = vmatpush2.msra.mxu0 0.0
    %656 = vmatprep.subr.mxu0 0.0
    %657 = vmatpush2.msra.mxu0 0.0
    %658 = vmatprep.subr.mxu0 0.0
    %659 = vmatpush2.msra.mxu0 0.0
    %660 = vmatprep.subr.mxu0 0.0
    %661 = vmatpush2.msra.mxu0 0.0
    %662 = vmatprep.subr.mxu0 0.0
    %663 = vmatpush2.msra.mxu0 0.0
    %664 = vmatprep.subr.mxu0 0.0
    %665 = vmatpush2.msra.mxu0 0.0
    %666 = vmatprep.subr.mxu0 0.0
    %667 = vmatpush2.msra.mxu0 0.0
    %668 = vmatprep.subr.mxu0 0.0
    %669 = vmatpush2.msra.mxu0 0.0
    %670 = vmatprep.subr.mxu0 0.0
    %671 = vmatpush2.msra.mxu0 0.0
    %672 = vmatprep.subr.mxu0 0.0
    %673 = vmatpush2.msra.mxu0 0.0
    %674 = vmatprep.subr.mxu0 0.0
    %675 = vmatpush2.msra.mxu0 0.0
    %676 = vmatprep.subr.mxu0 0.0
    %677 = vmatpush2.msra.mxu0 0.0
    %678 = vmatprep.mubr.f32.mxu0 0.0
    %679 = vmatmul.mubr.f32.gmra.mxu0 %v603
    %v680 = vpop.f32.mrf.mxu0
    %v681 = vadd.f32 %v585, %v680
    %v682 = vpop.f32.mrf.mxu0
    %683 = vmatprep.mubr.f32.mxu0 0.0
    %684 = vmatmul.mubr.f32.gmra.mxu0 %v606
    %v685 = vpop.f32.mrf.mxu0
    %v686 = vadd.f32 %v590, %v685
    %v687 = vpop.f32.mrf.mxu0
    %688 = vmatprep.mubr.f32.mxu0 0.0
    %689 = vmatmul.mubr.f32.gmra.mxu0 %v609
    %v690 = vpop.f32.mrf.mxu0
    %v691 = vadd.f32 %v595, %v690
    %v692 = vpop.f32.mrf.mxu0
    %693 = vmatprep.mubr.f32.mxu0 0.0
    %694 = vmatmul.mubr.f32.gmra.mxu0 %v612
    %v695 = vpop.f32.mrf.mxu0
    %v696 = vadd.f32 %v600, %v695
    %v697 = vpop.f32.mrf.mxu0
    %698 = vdwg.mxu0
    %v699 = vmax.f32 %v681, 0.0
    %v700 = vmax.f32 %v686, 0.0
    %v701 = vmax.f32 %v691, 0.0
    %v702 = vmax.f32 %v696, 0.0
    %s703 = scalar_lea.vmem %s1, 160
    %v704 = vld [vmem:[%s703] sm:$0xff]
    %v705 = vld [vmem:[%s703 + $0x8] sm:$0xff]
    %v706 = vld [vmem:[%s703 + $0x10] sm:$0xff]
    %v707 = vld [vmem:[%s703 + $0x18] sm:$0xff]
    %s708 = scalar_lea.vmem %s2, 160
    %v709 = vld [vmem:[%s708] sm:$0xff]
    %v710 = vld [vmem:[%s708 + $0x8] sm:$0xff]
    %v711 = vld [vmem:[%s708 + $0x10] sm:$0xff]
    %v712 = vld [vmem:[%s708 + $0x18] sm:$0xff]
    %714 = vset.pattern.permute.xlu0 0
    %715 = vperm.xlu0 %714, %v709
    %v716 = vpop.permute.xlu0 %715
    %719 = vset.pattern.permute.xlu0 0
    %720 = vperm.xlu0 %719, %v710
    %v721 = vpop.permute.xlu0 %720
    %724 = vset.pattern.permute.xlu0 0
    %725 = vperm.xlu0 %724, %v711
    %v726 = vpop.permute.xlu0 %725
    %729 = vset.pattern.permute.xlu0 0
    %730 = vperm.xlu0 %729, %v712
    %v731 = vpop.permute.xlu0 %730
    %v734 = vsel %vm61, %v704, 0
    %v737 = vsel %vm61, %v705, 0
    %v740 = vsel %vm61, %v706, 0
    %v743 = vsel %vm61, %v707, 0
    %745 = vmatprep.subr.mxu0 0.0
    %746 = vmatpush1.msra.mxu0 0.0
    %747 = vmatprep.subr.mxu0 0.0
    %748 = vmatpush1.msra.mxu0 0.0
    %749 = vmatprep.subr.mxu0 0.0
    %750 = vmatpush1.msra.mxu0 0.0
    %751 = vmatprep.subr.mxu0 0.0
    %752 = vmatpush1.msra.mxu0 0.0
    %753 = vmatprep.subr.mxu0 0.0
    %754 = vmatpush1.msra.mxu0 0.0
    %755 = vmatprep.subr.mxu0 0.0
    %756 = vmatpush1.msra.mxu0 0.0
    %757 = vmatprep.subr.mxu0 0.0
    %758 = vmatpush1.msra.mxu0 0.0
    %759 = vmatprep.subr.mxu0 0.0
    %760 = vmatpush1.msra.mxu0 0.0
    %761 = vmatprep.subr.mxu0 0.0
    %762 = vmatpush1.msra.mxu0 0.0
    %763 = vmatprep.subr.mxu0 0.0
    %764 = vmatpush1.msra.mxu0 0.0
    %765 = vmatprep.subr.mxu0 0.0
    %766 = vmatpush1.msra.mxu0 0.0
    %767 = vmatprep.subr.mxu0 0.0
    %768 = vmatpush1.msra.mxu0 0.0
    %769 = vmatprep.subr.mxu0 0.0
    %770 = vmatpush1.msra.mxu0 %v702
    %771 = vmatprep.subr.mxu0 0.0
    %772 = vmatpush1.msra.mxu0 %v701
    %773 = vmatprep.subr.mxu0 0.0
    %774 = vmatpush1.msra.mxu0 %v700
    %775 = vmatprep.subr.mxu0 0.0
    %776 = vmatpush1.msra.mxu0 %v699
    %777 = vmatprep.subr.mxu0 0.0
    %778 = vmatpush2.msra.mxu0 0.0
    %779 = vmatprep.subr.mxu0 0.0
    %780 = vmatpush2.msra.mxu0 0.0
    %781 = vmatprep.subr.mxu0 0.0
    %782 = vmatpush2.msra.mxu0 0.0
    %783 = vmatprep.subr.mxu0 0.0
    %784 = vmatpush2.msra.mxu0 0.0
    %785 = vmatprep.subr.mxu0 0.0
    %786 = vmatpush2.msra.mxu0 0.0
    %787 = vmatprep.subr.mxu0 0.0
    %788 = vmatpush2.msra.mxu0 0.0
    %789 = vmatprep.subr.mxu0 0.0
    %790 = vmatpush2.msra.mxu0 0.0
    %791 = vmatprep.subr.mxu0 0.0
    %792 = vmatpush2.msra.mxu0 0.0
    %793 = vmatprep.subr.mxu0 0.0
    %794 = vmatpush2.msra.mxu0 0.0
    %795 = vmatprep.subr.mxu0 0.0
    %796 = vmatpush2.msra.mxu0 0.0
    %797 = vmatprep.subr.mxu0 0.0
    %798 = vmatpush2.msra.mxu0 0.0
    %799 = vmatprep.subr.mxu0 0.0
    %800 = vmatpush2.msra.mxu0 0.0
    %801 = vmatprep.subr.mxu0 0.0
    %802 = vmatpush2.msra.mxu0 0.0
    %803 = vmatprep.subr.mxu0 0.0
    %804 = vmatpush2.msra.mxu0 0.0
    %805 = vmatprep.subr.mxu0 0.0
    %806 = vmatpush2.msra.mxu0 0.0
    %807 = vmatprep.subr.mxu0 0.0
    %808 = vmatpush2.msra.mxu0 0.0
    %809 = vmatprep.mubr.f32.mxu0 0.0
    %810 = vmatmul.mubr.f32.gmra.mxu0 %v734
    %v811 = vpop.f32.mrf.mxu0
    %v812 = vadd.f32 %v716, %v811
    %v813 = vpop.f32.mrf.mxu0
    %814 = vmatprep.mubr.f32.mxu0 0.0
    %815 = vmatmul.mubr.f32.gmra.mxu0 %v737
    %v816 = vpop.f32.mrf.mxu0
    %v817 = vadd.f32 %v721, %v816
    %v818 = vpop.f32.mrf.mxu0
    %819 = vmatprep.mubr.f32.mxu0 0.0
    %820 = vmatmul.mubr.f32.gmra.mxu0 %v740
    %v821 = vpop.f32.mrf.mxu0
    %v822 = vadd.f32 %v726, %v821
    %v823 = vpop.f32.mrf.mxu0
    %824 = vmatprep.mubr.f32.mxu0 0.0
    %825 = vmatmul.mubr.f32.gmra.mxu0 %v743
    %v826 = vpop.f32.mrf.mxu0
    %v827 = vadd.f32 %v731, %v826
    %v828 = vpop.f32.mrf.mxu0
    %829 = vdwg.mxu0
    %v830 = vmax.f32 %v812, 0.0
    %v831 = vmax.f32 %v817, 0.0
    %v832 = vmax.f32 %v822, 0.0
    %v833 = vmax.f32 %v827, 0.0
    %s834 = scalar_lea.vmem %s1, 192
    %v835 = vld [vmem:[%s834] sm:$0xff]
    %v836 = vld [vmem:[%s834 + $0x8] sm:$0xff]
    %v837 = vld [vmem:[%s834 + $0x10] sm:$0xff]
    %v838 = vld [vmem:[%s834 + $0x18] sm:$0xff]
    %s839 = scalar_lea.vmem %s2, 192
    %v840 = vld [vmem:[%s839] sm:$0xff]
    %v841 = vld [vmem:[%s839 + $0x8] sm:$0xff]
    %v842 = vld [vmem:[%s839 + $0x10] sm:$0xff]
    %v843 = vld [vmem:[%s839 + $0x18] sm:$0xff]
    %845 = vset.pattern.permute.xlu0 0
    %846 = vperm.xlu0 %845, %v840
    %v847 = vpop.permute.xlu0 %846
    %850 = vset.pattern.permute.xlu0 0
    %851 = vperm.xlu0 %850, %v841
    %v852 = vpop.permute.xlu0 %851
    %855 = vset.pattern.permute.xlu0 0
    %856 = vperm.xlu0 %855, %v842
    %v857 = vpop.permute.xlu0 %856
    %860 = vset.pattern.permute.xlu0 0
    %861 = vperm.xlu0 %860, %v843
    %v862 = vpop.permute.xlu0 %861
    %v865 = vsel %vm61, %v835, 0
    %v868 = vsel %vm61, %v836, 0
    %v871 = vsel %vm61, %v837, 0
    %v874 = vsel %vm61, %v838, 0
    %876 = vmatprep.subr.mxu0 0.0
    %877 = vmatpush1.msra.mxu0 0.0
    %878 = vmatprep.subr.mxu0 0.0
    %879 = vmatpush1.msra.mxu0 0.0
    %880 = vmatprep.subr.mxu0 0.0
    %881 = vmatpush1.msra.mxu0 0.0
    %882 = vmatprep.subr.mxu0 0.0
    %883 = vmatpush1.msra.mxu0 0.0
    %884 = vmatprep.subr.mxu0 0.0
    %885 = vmatpush1.msra.mxu0 0.0
    %886 = vmatprep.subr.mxu0 0.0
    %887 = vmatpush1.msra.mxu0 0.0
    %888 = vmatprep.subr.mxu0 0.0
    %889 = vmatpush1.msra.mxu0 0.0
    %890 = vmatprep.subr.mxu0 0.0
    %891 = vmatpush1.msra.mxu0 0.0
    %892 = vmatprep.subr.mxu0 0.0
    %893 = vmatpush1.msra.mxu0 0.0
    %894 = vmatprep.subr.mxu0 0.0
    %895 = vmatpush1.msra.mxu0 0.0
    %896 = vmatprep.subr.mxu0 0.0
    %897 = vmatpush1.msra.mxu0 0.0
    %898 = vmatprep.subr.mxu0 0.0
    %899 = vmatpush1.msra.mxu0 0.0
    %900 = vmatprep.subr.mxu0 0.0
    %901 = vmatpush1.msra.mxu0 %v833
    %902 = vmatprep.subr.mxu0 0.0
    %903 = vmatpush1.msra.mxu0 %v832
    %904 = vmatprep.subr.mxu0 0.0
    %905 = vmatpush1.msra.mxu0 %v831
    %906 = vmatprep.subr.mxu0 0.0
    %907 = vmatpush1.msra.mxu0 %v830
    %908 = vmatprep.subr.mxu0 0.0
    %909 = vmatpush2.msra.mxu0 0.0
    %910 = vmatprep.subr.mxu0 0.0
    %911 = vmatpush2.msra.mxu0 0.0
    %912 = vmatprep.subr.mxu0 0.0
    %913 = vmatpush2.msra.mxu0 0.0
    %914 = vmatprep.subr.mxu0 0.0
    %915 = vmatpush2.msra.mxu0 0.0
    %916 = vmatprep.subr.mxu0 0.0
    %917 = vmatpush2.msra.mxu0 0.0
    %918 = vmatprep.subr.mxu0 0.0
    %919 = vmatpush2.msra.mxu0 0.0
    %920 = vmatprep.subr.mxu0 0.0
    %921 = vmatpush2.msra.mxu0 0.0
    %922 = vmatprep.subr.mxu0 0.0
    %923 = vmatpush2.msra.mxu0 0.0
    %924 = vmatprep.subr.mxu0 0.0
    %925 = vmatpush2.msra.mxu0 0.0
    %926 = vmatprep.subr.mxu0 0.0
    %927 = vmatpush2.msra.mxu0 0.0
    %928 = vmatprep.subr.mxu0 0.0
    %929 = vmatpush2.msra.mxu0 0.0
    %930 = vmatprep.subr.mxu0 0.0
    %931 = vmatpush2.msra.mxu0 0.0
    %932 = vmatprep.subr.mxu0 0.0
    %933 = vmatpush2.msra.mxu0 0.0
    %934 = vmatprep.subr.mxu0 0.0
    %935 = vmatpush2.msra.mxu0 0.0
    %936 = vmatprep.subr.mxu0 0.0
    %937 = vmatpush2.msra.mxu0 0.0
    %938 = vmatprep.subr.mxu0 0.0
    %939 = vmatpush2.msra.mxu0 0.0
    %940 = vmatprep.mubr.f32.mxu0 0.0
    %941 = vmatmul.mubr.f32.gmra.mxu0 %v865
    %v942 = vpop.f32.mrf.mxu0
    %v943 = vadd.f32 %v847, %v942
    %v944 = vpop.f32.mrf.mxu0
    %945 = vmatprep.mubr.f32.mxu0 0.0
    %946 = vmatmul.mubr.f32.gmra.mxu0 %v868
    %v947 = vpop.f32.mrf.mxu0
    %v948 = vadd.f32 %v852, %v947
    %v949 = vpop.f32.mrf.mxu0
    %950 = vmatprep.mubr.f32.mxu0 0.0
    %951 = vmatmul.mubr.f32.gmra.mxu0 %v871
    %v952 = vpop.f32.mrf.mxu0
    %v953 = vadd.f32 %v857, %v952
    %v954 = vpop.f32.mrf.mxu0
    %955 = vmatprep.mubr.f32.mxu0 0.0
    %956 = vmatmul.mubr.f32.gmra.mxu0 %v874
    %v957 = vpop.f32.mrf.mxu0
    %v958 = vadd.f32 %v862, %v957
    %v959 = vpop.f32.mrf.mxu0
    %960 = vdwg.mxu0
    %v961 = vmax.f32 %v943, 0.0
    %v962 = vmax.f32 %v948, 0.0
    %v963 = vmax.f32 %v953, 0.0
    %v964 = vmax.f32 %v958, 0.0
    %s965 = scalar_lea.vmem %s1, 224
    %v966 = vld [vmem:[%s965] sm:$0xff]
    %v967 = vld [vmem:[%s965 + $0x8] sm:$0xff]
    %v968 = vld [vmem:[%s965 + $0x10] sm:$0xff]
    %v969 = vld [vmem:[%s965 + $0x18] sm:$0xff]
    %s970 = scalar_lea.vmem %s2, 224
    %v971 = vld [vmem:[%s970] sm:$0xff]
    %v972 = vld [vmem:[%s970 + $0x8] sm:$0xff]
    %v973 = vld [vmem:[%s970 + $0x10] sm:$0xff]
    %v974 = vld [vmem:[%s970 + $0x18] sm:$0xff]
    %976 = vset.pattern.permute.xlu0 0
    %977 = vperm.xlu0 %976, %v971
    %v978 = vpop.permute.xlu0 %977
    %981 = vset.pattern.permute.xlu0 0
    %982 = vperm.xlu0 %981, %v972
    %v983 = vpop.permute.xlu0 %982
    %985 = vset.pattern.permute.xlu0 0
    %986 = vperm.xlu0 %985, %v973
    %v987 = vpop.permute.xlu0 %986
    %989 = vset.pattern.permute.xlu0 0
    %990 = vperm.xlu0 %989, %v974
    %v991 = vpop.permute.xlu0 %990
    %v993 = vsel %vm61, %v966, 0
    %v996 = vsel %vm61, %v967, 0
    %v999 = vsel %vm61, %v968, 0
    %v1002 = vsel %vm61, %v969, 0
    %1004 = vmatprep.subr.mxu0 0.0
    %1005 = vmatpush1.msra.mxu0 0.0
    %1006 = vmatprep.subr.mxu0 0.0
    %1007 = vmatpush1.msra.mxu0 0.0
    %1008 = vmatprep.subr.mxu0 0.0
    %1009 = vmatpush1.msra.mxu0 0.0
    %1010 = vmatprep.subr.mxu0 0.0
    %1011 = vmatpush1.msra.mxu0 0.0
    %1012 = vmatprep.subr.mxu0 0.0
    %1013 = vmatpush1.msra.mxu0 0.0
    %1014 = vmatprep.subr.mxu0 0.0
    %1015 = vmatpush1.msra.mxu0 0.0
    %1016 = vmatprep.subr.mxu0 0.0
    %1017 = vmatpush1.msra.mxu0 0.0
    %1018 = vmatprep.subr.mxu0 0.0
    %1019 = vmatpush1.msra.mxu0 0.0
    %1020 = vmatprep.subr.mxu0 0.0
    %1021 = vmatpush1.msra.mxu0 0.0
    %1022 = vmatprep.subr.mxu0 0.0
    %1023 = vmatpush1.msra.mxu0 0.0
    %1024 = vmatprep.subr.mxu0 0.0
    %1025 = vmatpush1.msra.mxu0 0.0
    %1026 = vmatprep.subr.mxu0 0.0
    %1027 = vmatpush1.msra.mxu0 0.0
    %1028 = vmatprep.subr.mxu0 0.0
    %1029 = vmatpush1.msra.mxu0 %v964
    %1030 = vmatprep.subr.mxu0 0.0
    %1031 = vmatpush1.msra.mxu0 %v963
    %1032 = vmatprep.subr.mxu0 0.0
    %1033 = vmatpush1.msra.mxu0 %v962
    %1034 = vmatprep.subr.mxu0 0.0
    %1035 = vmatpush1.msra.mxu0 %v961
    %1036 = vmatprep.subr.mxu0 0.0
    %1037 = vmatpush2.msra.mxu0 0.0
    %1038 = vmatprep.subr.mxu0 0.0
    %1039 = vmatpush2.msra.mxu0 0.0
    %1040 = vmatprep.subr.mxu0 0.0
    %1041 = vmatpush2.msra.mxu0 0.0
    %1042 = vmatprep.subr.mxu0 0.0
    %1043 = vmatpush2.msra.mxu0 0.0
    %1044 = vmatprep.subr.mxu0 0.0
    %1045 = vmatpush2.msra.mxu0 0.0
    %1046 = vmatprep.subr.mxu0 0.0
    %1047 = vmatpush2.msra.mxu0 0.0
    %1048 = vmatprep.subr.mxu0 0.0
    %1049 = vmatpush2.msra.mxu0 0.0
    %1050 = vmatprep.subr.mxu0 0.0
    %1051 = vmatpush2.msra.mxu0 0.0
    %1052 = vmatprep.subr.mxu0 0.0
    %1053 = vmatpush2.msra.mxu0 0.0
    %1054 = vmatprep.subr.mxu0 0.0
    %1055 = vmatpush2.msra.mxu0 0.0
    %1056 = vmatprep.subr.mxu0 0.0
    %1057 = vmatpush2.msra.mxu0 0.0
    %1058 = vmatprep.subr.mxu0 0.0
    %1059 = vmatpush2.msra.mxu0 0.0
    %1060 = vmatprep.subr.mxu0 0.0
    %1061 = vmatpush2.msra.mxu0 0.0
    %1062 = vmatprep.subr.mxu0 0.0
    %1063 = vmatpush2.msra.mxu0 0.0
    %1064 = vmatprep.subr.mxu0 0.0
    %1065 = vmatpush2.msra.mxu0 0.0
    %1066 = vmatprep.subr.mxu0 0.0
    %1067 = vmatpush2.msra.mxu0 0.0
    %1068 = vmatprep.mubr.f32.mxu0 0.0
    %1069 = vmatmul.mubr.f32.gmra.mxu0 %v993
    %v1070 = vpop.f32.mrf.mxu0
    %v1071 = vadd.f32 %v978, %v1070
    %v1072 = vpop.f32.mrf.mxu0
    %1073 = vmatprep.mubr.f32.mxu0 0.0
    %1074 = vmatmul.mubr.f32.gmra.mxu0 %v996
    %v1075 = vpop.f32.mrf.mxu0
    %v1076 = vpop.f32.mrf.mxu0
    %1077 = vmatprep.mubr.f32.mxu0 0.0
    %1078 = vmatmul.mubr.f32.gmra.mxu0 %v999
    %v1079 = vpop.f32.mrf.mxu0
    %v1080 = vpop.f32.mrf.mxu0
    %1081 = vmatprep.mubr.f32.mxu0 0.0
    %1082 = vmatmul.mubr.f32.gmra.mxu0 %v1002
    %v1083 = vpop.f32.mrf.mxu0
    %v1084 = vpop.f32.mrf.mxu0
    %1085 = vdwg.mxu0
    %v1087 = vrot.slane %v532, 7
    %v1090 = vrot.slane %v549, 5
    %vm1092 = vcmask 1040384
    %v1093 = vsel %vm1092, %v1071, %v1087
    %v1094 = vsel %vm568, %v1093, %v1090
    %vm1095 = vcmask 1044480
    %v1096 = vsel %vm1095, %v1094, 0.0
    %1097 = vst [vmem:[#allocation5] sm:$0xff] %v1096
    // Predicated region
    $region18: #{tpu_custom_call.1} parent=1 // pred_check
      _
    $region19: #{tpu_custom_call.1} parent=1 // pred_check_branch
      %1099 = sbr.rel (0) target = $region21
    $region20: #{tpu_custom_call.1} parent=1 // pred_region
      %s1101 = ssub.s32 128, 128
      %1102 = vsyncadd [#allocation4], %s1101
      %s1104 = sshll.u32 [#allocation5], 4
      %s1105 = int_to_ptr.vmem [resolvable:$true] %s1104
      %1107 = dma.vmem_to_hbm [thread:$0]  %s1105, 128, %s3, [#allocation4]
    $region21: #{tpu_custom_call.1} parent=1 // pred_fallthru
      _
    // Predicated region
    $region22: #{tpu_custom_call.1} parent=1 // pred_check
      _
    $region23: #{tpu_custom_call.1} parent=1 // pred_check_branch
      %1109 = sbr.rel (0) target = $region25
    $region24: #{tpu_custom_call.1} parent=1 // pred_region
      %1110 = dma.done [#allocation4], 128
    $region25: #{tpu_custom_call.1} parent=1 // pred_fallthru
      _
    %1111 = vsyncpa [#allocation3], 1
    %1112 = vsyncpa [#allocation4], 1

</llo_original>
